<compile_context>
chip_gen: v7x
topology: tpu7x:2x2x1
jax: 0.10.0
libtpu: 0.0.40
codegen_flags: <defaults>
</compile_context>

<pallas_src>
import functools
import math

import jax
import jax.numpy as jnp
import numpy as np
from jax.experimental import pallas as pl
from jax.experimental.pallas import tpu as pltpu


_VMEM_LIMIT = 48 * 1024 * 1024       # scoped VMEM limit (safe on v7x 64 MiB)
_RESIDENT_BUDGET = 36 * 1024 * 1024  # budget for the column-resident stage 2
_TILED_BUDGET = 36 * 1024 * 1024     # budget for the tiled stage-2 blocks
_STAGE1_BUDGET = 36 * 1024 * 1024    # budget for stage-1 blocks


def _round_up(x, m):
    return ((x + m - 1) // m) * m


def _pick_row_tile(b):
    cap = _round_up(b, 8)
    for t in (512, 256, 128, 64, 32, 16, 8):
        if t <= cap:
            return t
    return 8


# ----------------------------- Stage 1 ------------------------------------- #
def _normalize_kernel(q_ref, k_ref, projs_ref, *, scale, d, nq_blocks):
    """Normalize one row block of queries (i < nq_blocks) or keys (i >= nq_blocks)."""
    i = pl.program_id(0)
    d_pad = projs_ref.shape[1]

    def emit(x):
        x = x.astype(jnp.float32)
        # F.normalize(x, dim=1), eps=1e-12  ==  x * rsqrt(max(||x||^2, 1e-24)).
        nrm2 = jnp.maximum(jnp.sum(x * x, axis=1, keepdims=True),
                           jnp.float32(1e-24))
        y = (x * jax.lax.rsqrt(nrm2) * jnp.float32(scale)).astype(projs_ref.dtype)
        if d_pad > d:
            projs_ref[:, 0:d] = y
            projs_ref[:, d:] = jnp.zeros((y.shape[0], d_pad - d), projs_ref.dtype)
        else:
            projs_ref[...] = y

    @pl.when(i < nq_blocks)
    def _():
        emit(q_ref[...])

    @pl.when(i >= nq_blocks)
    def _():
        emit(k_ref[...])


# ----------------------------- Stage 2 ------------------------------------- #
def _lse_resident_kernel(rows_ref, cols_ref, lse_ref, *, inv_t, pad_corr):
    """Full-width LSE for one row block; column slab is VMEM-resident."""
    rows = rows_ref[...]
    s = jax.lax.dot_general(rows, cols_ref[...],
                            dimension_numbers=(((1,), (1,)), ((), ())),
                            preferred_element_type=jnp.float32)
    # Constant-max stabilization: logits/T <= 1/T for unit-norm rows.
    acc = jnp.sum(jnp.exp(s - inv_t), axis=1, keepdims=True)
    # Exact-ish self-similarity correction (replaces per-element diag masking).
    r32 = rows.astype(jnp.float32)
    self_sim = jnp.sum(r32 * r32, axis=1, keepdims=True)
    acc = acc - jnp.exp(self_sim - inv_t) - pad_corr
    lse = inv_t + jnp.log(jnp.maximum(acc, jnp.float32(1e-30)))
    lse_ref[...] = jnp.broadcast_to(lse, lse_ref.shape)


def _lse_tiled_kernel(rows_ref, cols_ref, lse_ref, acc_ref, *, inv_t, pad_corr):
    """Flash-style accumulation over column tiles (reduction axis last)."""
    j = pl.program_id(1)

    @pl.when(j == 0)
    def _():
        acc_ref[...] = jnp.zeros_like(acc_ref)

    s = jax.lax.dot_general(rows_ref[...], cols_ref[...],
                            dimension_numbers=(((1,), (1,)), ((), ())),
                            preferred_element_type=jnp.float32)
    acc_ref[...] += jnp.sum(jnp.exp(s - inv_t), axis=1, keepdims=True)

    @pl.when(j == pl.num_programs(1) - 1)
    def _():
        r32 = rows_ref[...].astype(jnp.float32)
        self_sim = jnp.sum(r32 * r32, axis=1, keepdims=True)
        a = acc_ref[...] - jnp.exp(self_sim - inv_t) - pad_corr
        lse = inv_t + jnp.log(jnp.maximum(a, jnp.float32(1e-30)))
        lse_ref[...] = jnp.broadcast_to(lse, lse_ref.shape)


# ----------------------------- Wrapper ------------------------------------- #
def simclr_loss(queries: jax.Array, keys: jax.Array, temperature: float = 0.1,
                matmul_dtype=jnp.bfloat16, force_tiled: bool = False) -> jax.Array:
    assert queries.shape == keys.shape and queries.ndim == 2
    b, d = queries.shape
    n = 2 * b
    inv_t = 1.0 / float(temperature)
    isz = jnp.dtype(matmul_dtype).itemsize
    d_pad = _round_up(d, 128)

    # ---- tile selection (kept within a v7x-safe VMEM budget) --------------- #
    tm = _pick_row_tile(b)
    tn = min(tm, 256)
    while tm > 128 and (2 * (tm + tn) * d_pad * isz + 2 * tm * 128 * 4
                        + 2 * tm * tn * 4) > _TILED_BUDGET:
        tm //= 2
        tn = min(tm, 256)

    b_pad = _round_up(b, tm)
    n_pad = 2 * b_pad

    # Pad the batch only when it is not already a multiple of the row tile.
    if b_pad > b:
        pad = ((0, b_pad - b), (0, 0))
        queries = jnp.pad(queries, pad)
        keys = jnp.pad(keys, pad)

    # ---- Stage 1: tiled normalize + temperature fold ------------------------ #
    tb = tm
    while tb % 16 == 0 and (4 * tb * d * 4 + 2 * tb * d_pad * isz) > _STAGE1_BUDGET:
        tb //= 2
    nq_blocks = b_pad // tb
    scale = math.sqrt(inv_t)

    projs = pl.pallas_call(
        functools.partial(_normalize_kernel, scale=scale, d=d,
                          nq_blocks=nq_blocks),
        out_shape=jax.ShapeDtypeStruct((n_pad, d_pad), matmul_dtype),
        grid=(2 * nq_blocks,),
        in_specs=[
            pl.BlockSpec((tb, d), lambda i: (jnp.minimum(i, nq_blocks - 1), 0)),
            pl.BlockSpec((tb, d), lambda i: (jnp.maximum(i - nq_blocks, 0), 0)),
        ],
        out_specs=pl.BlockSpec((tb, d_pad), lambda i: (i, 0)),
        compiler_params=pltpu.CompilerParams(
            dimension_semantics=("parallel",),
            vmem_limit_bytes=_VMEM_LIMIT),
    )(queries, keys)

    # ---- Stage 2: diagonal-excluded row-wise LSE of the Gram matrix --------- #
    pad_corr = float(n_pad - n) * math.exp(-inv_t)

    tm_r = min(tm, 256)
    resident_bytes = (2 * n_pad * d_pad * isz          # resident column slab (x2 buf)
                      + 2 * tm_r * d_pad * isz         # row blocks (double-buffered)
                      + 2 * tm_r * 128 * 4             # lse output blocks
                      + 2 * tm_r * n_pad * 4)          # fp32 logits/exp intermediates
    use_resident = (not force_tiled) and resident_bytes <= _RESIDENT_BUDGET

    if use_resident:
        nr = n_pad // tm_r
        cost = pl.CostEstimate(
            flops=int(2 * n_pad * n_pad * d_pad),
            transcendentals=int(n_pad * n_pad),
            bytes_accessed=int(2 * n_pad * d_pad * isz + n_pad * 128 * 4))
        lse = pl.pallas_call(
            functools.partial(_lse_resident_kernel, inv_t=inv_t,
                              pad_corr=pad_corr),
            out_shape=jax.ShapeDtypeStruct((n_pad, 128), jnp.float32),
            grid_spec=pltpu.PrefetchScalarGridSpec(
                num_scalar_prefetch=0,
                grid=(nr,),
                in_specs=[
                    pl.BlockSpec((tm_r, d_pad), lambda i: (i, 0)),
                    pl.BlockSpec((n_pad, d_pad), lambda i: (0, 0)),  # resident
                ],
                out_specs=pl.BlockSpec((tm_r, 128), lambda i: (i, 0)),
            ),
            compiler_params=pltpu.CompilerParams(
                dimension_semantics=("parallel",),
                vmem_limit_bytes=_VMEM_LIMIT),
            cost_estimate=cost,
        )(projs, projs)
    else:
        nr, nc = n_pad // tm, n_pad // tn
        cost = pl.CostEstimate(
            flops=int(2 * n_pad * n_pad * d_pad),
            transcendentals=int(n_pad * n_pad),
            bytes_accessed=int((1 + nr) * n_pad * d_pad * isz + n_pad * 128 * 4))
        lse = pl.pallas_call(
            functools.partial(_lse_tiled_kernel, inv_t=inv_t, pad_corr=pad_corr),
            out_shape=jax.ShapeDtypeStruct((n_pad, 128), jnp.float32),
            grid_spec=pltpu.PrefetchScalarGridSpec(
                num_scalar_prefetch=0,
                grid=(nr, nc),
                in_specs=[
                    pl.BlockSpec((tm, d_pad), lambda i, j: (i, 0)),
                    pl.BlockSpec((tn, d_pad), lambda i, j: (j, 0)),
                ],
                out_specs=pl.BlockSpec((tm, 128), lambda i, j: (i, 0)),
                scratch_shapes=[pltpu.VMEM((tm, 1), jnp.float32)],
            ),
            compiler_params=pltpu.CompilerParams(
                dimension_semantics=("parallel", "arbitrary"),
                vmem_limit_bytes=_VMEM_LIMIT),
            cost_estimate=cost,
        )(projs, projs)

    # ---- Epilogue (tiny O(n*D) / O(n) jnp reductions) ----------------------- #
    # Positive pairs: <projs_q_i, projs_k_i> = <qn_i, kn_i> / T, counted twice
    # (row i and row i+b); padded rows are zero so they contribute nothing.
    pq = projs[:b_pad].astype(jnp.float32)
    pk = projs[b_pad:].astype(jnp.float32)
    pos_total = 2.0 * jnp.sum(pq * pk)

    lse_col = lse[:, 0]
    lse_sum = jnp.sum(lse_col[:b]) + jnp.sum(lse_col[b_pad:b_pad + b])
    loss = (lse_sum - pos_total) / jnp.float32(n)
    return loss


# --------------------------- Verification ----------------------------------- #
def _reference_loss_numpy(queries, keys, temperature=0.1):
    """Pure-numpy mirror of the PyTorch forward (fp64)."""
    q = np.asarray(queries, dtype=np.float64)
    k = np.asarray(keys, dtype=np.float64)
    qn = q / np.maximum(np.linalg.norm(q, axis=1, keepdims=True), 1e-12)
    kn = k / np.maximum(np.linalg.norm(k, axis=1, keepdims=True), 1e-12)
    projs = np.concatenate([qn, kn], axis=0)
    b = q.shape[0]
    n = 2 * b
    logits = projs @ projs.T
    mask = np.eye(n, dtype=bool)
    logits = logits[~mask].reshape(n, n - 1) / temperature
    labels = np.concatenate([np.arange(b) + b - 1, np.arange(b)])
    m = logits.max(axis=1, keepdims=True)
    lse = m[:, 0] + np.log(np.exp(logits - m).sum(axis=1))
    loss = np.sum(lse - logits[np.arange(n), labels]) / n
    return loss


if __name__ == "__main__":
    B, D = 8, 32
    key = jax.random.PRNGKey(0)
    kq, kk = jax.random.split(key)
    queries = jax.random.normal(kq, (B, D), dtype=jnp.float32)
    keys = jax.random.normal(kk, (B, D), dtype=jnp.float32)

    ref = _reference_loss_numpy(np.array(queries), np.array(keys), 0.1)

    # Algorithmic check in fp32 (tight-ish tolerance), both stage-2 paths.
    for force_tiled in (False, True):
        loss32 = jax.block_until_ready(
            simclr_loss(queries, keys, 0.1, matmul_dtype=jnp.float32,
                        force_tiled=force_tiled))
        np.testing.assert_allclose(np.array(loss32), ref, rtol=1e-3, atol=1e-3)

    # Default (bf16 MXU) path: input quantization only, fp32 accumulation.
    loss_bf16 = jax.block_until_ready(simclr_loss(queries, keys, 0.1))
    np.testing.assert_allclose(np.array(loss_bf16), ref, rtol=5e-2, atol=5e-2)

    print("KERNEL_OK")
</pallas_src>

<mosaic_0001>
module attributes {stable_mosaic.version = 11 : i64} {
  func.func @_normalize_kernel(%arg0: i32, %arg1: memref<8x32xf32, #tpu.memory_space<vmem>>, %arg2: memref<8x32xf32, #tpu.memory_space<vmem>>, %arg3: memref<8x128xf32, #tpu.memory_space<vmem>>) attributes {dimension_semantics = [#tpu.dimension_semantics<parallel>], iteration_bounds = array<i64: 2>, scalar_prefetch = 0 : i64, scratch_operands = 0 : i64, tpu.core_type = #tpu.core_type<tc>, window_params = [{transform_indices = @transform_0, window_bounds = array<i64: 8, 32>}, {transform_indices = @transform_1, window_bounds = array<i64: 8, 32>}, {transform_indices = @transform_2, window_bounds = array<i64: 8, 128>}]} {
    %c1_i32 = arith.constant 1 : i32
    %0 = arith.cmpi slt, %arg0, %c1_i32 : i32
    %1 = arith.extui %0 : i1 to i32
    %c0_i32 = arith.constant 0 : i32
    %2 = arith.cmpi ne, %1, %c0_i32 : i32
    scf.if %2 {
      %c0 = arith.constant 0 : index
      %c0_2 = arith.constant 0 : index
      %6 = vector.load %arg1[%c0, %c0_2] : memref<8x32xf32, #tpu.memory_space<vmem>>, vector<8x32xf32>
      %7 = arith.mulf %6, %6 : vector<8x32xf32>
      %cst = arith.constant dense<0.000000e+00> : vector<8xf32>
      %8 = vector.multi_reduction <add>, %7, %cst [1] : vector<8x32xf32> to vector<8xf32>
      %9 = vector.shape_cast %8 : vector<8xf32> to vector<8x1xf32>
      %cst_3 = arith.constant 1.000000e-24 : f32
      %10 = vector.broadcast %cst_3 : f32 to vector<8x1xf32>
      %11 = arith.maximumf %9, %10 : vector<8x1xf32>
      %12 = math.rsqrt %11 : vector<8x1xf32>
      %13 = vector.broadcast %12 : vector<8x1xf32> to vector<8x32xf32>
      %14 = arith.mulf %6, %13 : vector<8x32xf32>
      %cst_4 = arith.constant 3.1622777 : f32
      %15 = vector.broadcast %cst_4 : f32 to vector<8x32xf32>
      %16 = arith.mulf %14, %15 : vector<8x32xf32>
      %c0_5 = arith.constant 0 : index
      %c0_6 = arith.constant 0 : index
      %17 = vector.load %arg3[%c0_5, %c0_6] : memref<8x128xf32, #tpu.memory_space<vmem>>, vector<8x32xf32>
      tpu.vector_store %arg3[%c0_5, %c0_6], %16 {strides = array<i32>} : memref<8x128xf32, #tpu.memory_space<vmem>>, vector<8x32xf32>,
      %cst_7 = arith.constant 0.000000e+00 : f32
      %18 = vector.broadcast %cst_7 : f32 to vector<8x96xf32>
      %c0_8 = arith.constant 0 : index
      %c32 = arith.constant 32 : index
      %19 = vector.load %arg3[%c0_8, %c32] : memref<8x128xf32, #tpu.memory_space<vmem>>, vector<8x96xf32>
      tpu.vector_store %arg3[%c0_8, %c32], %18 {strides = array<i32>} : memref<8x128xf32, #tpu.memory_space<vmem>>, vector<8x96xf32>,
    } else {
    }
    %c1_i32_0 = arith.constant 1 : i32
    %3 = arith.cmpi sge, %arg0, %c1_i32_0 : i32
    %4 = arith.extui %3 : i1 to i32
    %c0_i32_1 = arith.constant 0 : i32
    %5 = arith.cmpi ne, %4, %c0_i32_1 : i32
    scf.if %5 {
      %c0 = arith.constant 0 : index
      %c0_2 = arith.constant 0 : index
      %6 = vector.load %arg2[%c0, %c0_2] : memref<8x32xf32, #tpu.memory_space<vmem>>, vector<8x32xf32>
      %7 = arith.mulf %6, %6 : vector<8x32xf32>
      %cst = arith.constant dense<0.000000e+00> : vector<8xf32>
      %8 = vector.multi_reduction <add>, %7, %cst [1] : vector<8x32xf32> to vector<8xf32>
      %9 = vector.shape_cast %8 : vector<8xf32> to vector<8x1xf32>
      %cst_3 = arith.constant 1.000000e-24 : f32
      %10 = vector.broadcast %cst_3 : f32 to vector<8x1xf32>
      %11 = arith.maximumf %9, %10 : vector<8x1xf32>
      %12 = math.rsqrt %11 : vector<8x1xf32>
      %13 = vector.broadcast %12 : vector<8x1xf32> to vector<8x32xf32>
      %14 = arith.mulf %6, %13 : vector<8x32xf32>
      %cst_4 = arith.constant 3.1622777 : f32
      %15 = vector.broadcast %cst_4 : f32 to vector<8x32xf32>
      %16 = arith.mulf %14, %15 : vector<8x32xf32>
      %c0_5 = arith.constant 0 : index
      %c0_6 = arith.constant 0 : index
      %17 = vector.load %arg3[%c0_5, %c0_6] : memref<8x128xf32, #tpu.memory_space<vmem>>, vector<8x32xf32>
      tpu.vector_store %arg3[%c0_5, %c0_6], %16 {strides = array<i32>} : memref<8x128xf32, #tpu.memory_space<vmem>>, vector<8x32xf32>,
      %cst_7 = arith.constant 0.000000e+00 : f32
      %18 = vector.broadcast %cst_7 : f32 to vector<8x96xf32>
      %c0_8 = arith.constant 0 : index
      %c32 = arith.constant 32 : index
      %19 = vector.load %arg3[%c0_8, %c32] : memref<8x128xf32, #tpu.memory_space<vmem>>, vector<8x96xf32>
      tpu.vector_store %arg3[%c0_8, %c32], %18 {strides = array<i32>} : memref<8x128xf32, #tpu.memory_space<vmem>>, vector<8x96xf32>,
    } else {
    }
    return
  }
  func.func @transform_0(%arg0: i32) -> (i32, i32) {
    %c0_i32 = arith.constant 0 : i32
    %0 = arith.minsi %arg0, %c0_i32 : i32
    %c0_i32_0 = arith.constant 0 : i32
    %c0_i32_1 = arith.constant 0 : i32
    return %0, %c0_i32_0 : i32, i32
  }
  func.func @transform_1(%arg0: i32) -> (i32, i32) {
    %c1_i32 = arith.constant 1 : i32
    %0 = arith.subi %arg0, %c1_i32 : i32
    %c0_i32 = arith.constant 0 : i32
    %1 = arith.maxsi %0, %c0_i32 : i32
    %c0_i32_0 = arith.constant 0 : i32
    %c0_i32_1 = arith.constant 0 : i32
    return %1, %c0_i32_0 : i32, i32
  }
  func.func @transform_2(%arg0: i32) -> (i32, i32) {
    %c0_i32 = arith.constant 0 : i32
    %c0_i32_0 = arith.constant 0 : i32
    return %arg0, %c0_i32 : i32, i32
  }
}

</mosaic_0001>

<llo_original>
// kernel: tpu_custom_call.1
$region0: #{tpu_custom_call.1}
  #allocation0 [shape = 'u32[]', space=smem, size = 0x4, offset = 0x4, fixed_abs, tag = 'smem constant byte address 0x4 - core index']
  #allocation1 [shape = 'u32[144,128]{1,0:T(1,128)}', space=vmem, size = 0x12000, scoped, tag = 'internal scratch']
  %s0 = inlined_call_operand.hbm [shape: f32[8,32], index: 0, kind: input, shape index: {}]
  %s1 = inlined_call_operand.hbm [shape: f32[8,32], index: 1, kind: input, shape index: {}]
  %s2 = inlined_call_operand.hbm [shape: f32[16,128], index: 2, kind: output, shape index: {}]
  %s3 = sld [smem:[#allocation0]]
  $region57: #{tpu_custom_call.1} parent=0
    _
  %s5 = ssub.s32 1, %s3
  %s6 = scalar_select 0, %s5, %s3
  $region1: #{tpu_custom_call.1} parent=0
    #allocation2 [shape = 'u8[8192]{0}', space=vmem, size = 0x2000, scoped, tag = 'input window, operand 0']
    #allocation3 [shape = 's32[2]{0}', space=sflag, size = 0x8, scoped, tag = 'scoped memory for tpu_custom_call.1']
    #allocation4 [shape = 's32[2]{0}', space=sflag, size = 0x8, scoped, tag = 'scoped memory for tpu_custom_call.1']
    #allocation5 [shape = 'u8[8192]{0}', space=vmem, size = 0x2000, scoped, tag = 'input window, operand 1']
    #allocation6 [shape = 's32[2]{0}', space=sflag, size = 0x8, scoped, tag = 'scoped memory for tpu_custom_call.1']
    #allocation7 [shape = 'u8[8192]{0}', space=vmem, size = 0x2000, scoped, tag = 'output window, operand 0']
    %7 = vsyncpa [#allocation3], 0
    %s8 = scalar_lea.sflag [#allocation3], 1
    %9 = vsyncpa %s8, 0
    %10 = vsyncpa [#allocation6], 0
    %s11 = scalar_lea.sflag [#allocation6], 1
    %12 = vsyncpa %s11, 0
    %13 = vsyncpa [#allocation4], 0
    %s14 = scalar_lea.sflag [#allocation4], 1
    %15 = vsyncpa %s14, 0
    loop: start=0, step=1, limit=4
    $region2: #{tpu_custom_call.1} parent=1 // loop_pre_header
      _
    $region3: #{tpu_custom_call.1} parent=1 // loop_header
      %s17 = sphi 0, %s21
      %p18 = scmp.ge.s32.totalorder %s17, 4
      %s31 = sphi 0, %s33
      %s34 = sphi 0, %s31
      %s35 = sphi 0, %s34
      %s51 = sphi 0, %s35
      %s63 = sphi 0, %s65
      %s66 = sphi 0, %s63
      %s67 = sphi 0, %s66
      %s83 = sphi 0, %s67
      %s89 = sphi 0, %s91
      %s92 = sphi 0, %s89
      %s93 = sphi 0, %s92
      %s109 = sphi 0, %s93
    $region4: #{tpu_custom_call.1} parent=1 // loop_header_branch
      %20 = sbr.rel (%p18) target = $region8
    $region5: #{tpu_custom_call.1} parent=1 // loop_body
      %s22 = ssub.s32 %s17, 1
      %s23 = ssub.s32 %s17, 2
      %s24 = sadd.s32 %s17, 1
      %p25 = scmp.lt.s32.totalorder %s17, 0
      %s26 = scalar_select %p25, %s17, 0
      %p27 = scmp.lt.s32.totalorder %s24, 0
      %s28 = scalar_select %p27, %s24, 0
      %s29 = ssub.s32 %s26, %s28
      %p30 = scmp.eq.s32.totalorder %s29, 0
      %s32 = sadd.s32 %s31, 1
      %s33 = scalar_select %p30, %s31, %s32
      %p36 = pneg %p30
      %p37 = scmp.eq.s32.totalorder %s17, 1
      %p38 = por %p36, %p37
      %p39 = scmp.ne.s32.totalorder %s31, %s34
      %p40 = scmp.eq.s32.totalorder %s17, 0
      %p41 = por %p39, %p40
      %p42 = scmp.ne.s32.totalorder %s31, %s34
      %p43 = scmp.eq.s32.totalorder %s22, 1
      %p44 = por %p42, %p43
      %p45 = scmp.ne.s32.totalorder %s34, %s35
      %p46 = scmp.eq.s32.totalorder %s22, 0
      %p47 = por %p45, %p46
      %p48 = scmp.ne.s32.totalorder %s34, %s35
      %p49 = scmp.eq.s32.totalorder %s23, 1
      %p50 = por %p48, %p49
      %p52 = scmp.ne.s32.totalorder %s35, %s51
      %p53 = scmp.eq.s32.totalorder %s23, 0
      %p54 = por %p52, %p53
      %s55 = ssub.s32 %s17, 1
      %p56 = scmp.gt.s32.totalorder %s55, 0
      %s57 = scalar_select %p56, %s55, 0
      %s58 = ssub.s32 %s24, 1
      %p59 = scmp.gt.s32.totalorder %s58, 0
      %s60 = scalar_select %p59, %s58, 0
      %s61 = ssub.s32 %s57, %s60
      %p62 = scmp.eq.s32.totalorder %s61, 0
      %s64 = sadd.s32 %s63, 1
      %s65 = scalar_select %p62, %s63, %s64
      %p68 = pneg %p62
      %p69 = scmp.eq.s32.totalorder %s17, 1
      %p70 = por %p68, %p69
      %p71 = scmp.ne.s32.totalorder %s63, %s66
      %p72 = scmp.eq.s32.totalorder %s17, 0
      %p73 = por %p71, %p72
      %p74 = scmp.ne.s32.totalorder %s63, %s66
      %p75 = scmp.eq.s32.totalorder %s22, 1
      %p76 = por %p74, %p75
      %p77 = scmp.ne.s32.totalorder %s66, %s67
      %p78 = scmp.eq.s32.totalorder %s22, 0
      %p79 = por %p77, %p78
      %p80 = scmp.ne.s32.totalorder %s66, %s67
      %p81 = scmp.eq.s32.totalorder %s23, 1
      %p82 = por %p80, %p81
      %p84 = scmp.ne.s32.totalorder %s67, %s83
      %p85 = scmp.eq.s32.totalorder %s23, 0
      %p86 = por %p84, %p85
      %s87 = ssub.s32 %s17, %s24
      %p88 = scmp.eq.s32.totalorder %s87, 0
      %s90 = sadd.s32 %s89, 1
      %s91 = scalar_select %p88, %s89, %s90
      %p94 = pneg %p88
      %p95 = scmp.eq.s32.totalorder %s17, 1
      %p96 = por %p94, %p95
      %p97 = scmp.ne.s32.totalorder %s89, %s92
      %p98 = scmp.eq.s32.totalorder %s17, 0
      %p99 = por %p97, %p98
      %p100 = scmp.ne.s32.totalorder %s89, %s92
      %p101 = scmp.eq.s32.totalorder %s22, 1
      %p102 = por %p100, %p101
      %p103 = scmp.ne.s32.totalorder %s92, %s93
      %p104 = scmp.eq.s32.totalorder %s22, 0
      %p105 = por %p103, %p104
      %p106 = scmp.ne.s32.totalorder %s92, %s93
      %p107 = scmp.eq.s32.totalorder %s23, 1
      %p108 = por %p106, %p107
      %p110 = scmp.ne.s32.totalorder %s93, %s109
      %p111 = scmp.eq.s32.totalorder %s23, 0
      %p112 = por %p110, %p111
      %p113 = scmp.le.s32.totalorder 1, %s17
      %p114 = scmp.lt.s32.totalorder %s17, 3
      %p115 = pnand %p113, %p114
      %p116 = pneg %p115
      // Predicated region
      $region9: #{tpu_custom_call.1} parent=5 // pred_check
        _
      $region10: #{tpu_custom_call.1} parent=5 // pred_check_branch
        %118 = sbr.rel (%p115) target = $region12
      $region11: #{tpu_custom_call.1} parent=5 // pred_region
        %s119 = ssub.s32 %s17, 1
      $region12: #{tpu_custom_call.1} parent=5 // pred_fallthru
        _
      %p120 = scmp.lt.s32.totalorder %s17, 2
      // Predicated region
      $region13: #{tpu_custom_call.1} parent=5 // pred_check
        %p121 = pneg %p120
      $region14: #{tpu_custom_call.1} parent=5 // pred_check_branch
        %123 = sbr.rel (%p121) target = $region16
      $region15: #{tpu_custom_call.1} parent=5 // pred_region
        // Predicated region
        $region17: #{tpu_custom_call.1} parent=15 // pred_check
          %p124 = pneg %p41
        $region18: #{tpu_custom_call.1} parent=15 // pred_check_branch
          %126 = sbr.rel (%p124) target = $region20
        $region19: #{tpu_custom_call.1} parent=15 // pred_region
          %s127 = sand.u32 %s31, 1
          %s128 = scalar_lea.sflag [#allocation3], %s127
          %s129 = sand.u32 %s31, 1
          %s130 = smul.addr %s129, 8
          %s131 = scalar_lea.vmem [#allocation2], %s130
          %p132 = scmp.lt.s32.totalorder %s17, 0
          %s133 = scalar_select %p132, %s17, 0
          %s135 = ssub.s32 128, 128
          %136 = vsyncadd %s128, %s135
          %s137 = smul.addr %s133, 128
          %s138 = scalar_lea.hbm %s0, %s137
          %s140 = sshll.u32 %s131, 4
          %s141 = int_to_ptr.vmem [resolvable:$true] %s140
          %143 = dma.hbm_to_vmem [thread:$0]  %s138, 128, %s141, %s128
        $region20: #{tpu_custom_call.1} parent=15 // pred_fallthru
          _
        // Predicated region
        $region21: #{tpu_custom_call.1} parent=15 // pred_check
          %p144 = pneg %p73
        $region22: #{tpu_custom_call.1} parent=15 // pred_check_branch
          %146 = sbr.rel (%p144) target = $region24
        $region23: #{tpu_custom_call.1} parent=15 // pred_region
          %s147 = sand.u32 %s63, 1
          %s148 = scalar_lea.sflag [#allocation6], %s147
          %s149 = sand.u32 %s63, 1
          %s150 = smul.addr %s149, 8
          %s151 = scalar_lea.vmem [#allocation5], %s150
          %s152 = ssub.s32 %s17, 1
          %p153 = scmp.gt.s32.totalorder %s152, 0
          %s154 = scalar_select %p153, %s152, 0
          %s156 = ssub.s32 128, 128
          %157 = vsyncadd %s148, %s156
          %s158 = smul.addr %s154, 128
          %s159 = scalar_lea.hbm %s1, %s158
          %s161 = sshll.u32 %s151, 4
          %s162 = int_to_ptr.vmem [resolvable:$true] %s161
          %164 = dma.hbm_to_vmem [thread:$0]  %s159, 128, %s162, %s148
        $region24: #{tpu_custom_call.1} parent=15 // pred_fallthru
          _
      $region16: #{tpu_custom_call.1} parent=5 // pred_fallthru
        _
      %p165 = scmp.le.s32.totalorder 1, %s17
      %p166 = scmp.lt.s32.totalorder %s17, 3
      %p167 = pnand %p165, %p166
      %p168 = pneg %p167
      // Predicated region
      $region25: #{tpu_custom_call.1} parent=5 // pred_check
        _
      $region26: #{tpu_custom_call.1} parent=5 // pred_check_branch
        %170 = sbr.rel (%p167) target = $region28
      $region27: #{tpu_custom_call.1} parent=5 // pred_region
        %s171 = ssub.s32 %s17, 1
        %s172 = sand.u32 %s34, 1
        %s173 = scalar_lea.sflag [#allocation3], %s172
        %s174 = sand.u32 %s34, 1
        %s175 = smul.addr %s174, 8
        %s176 = scalar_lea.vmem [#allocation2], %s175
        // Predicated region
        $region29: #{tpu_custom_call.1} parent=27 // pred_check
          %p177 = pneg %p47
        $region30: #{tpu_custom_call.1} parent=27 // pred_check_branch
          %179 = sbr.rel (%p177) target = $region32
        $region31: #{tpu_custom_call.1} parent=27 // pred_region
          %180 = dma.done %s173, 128
        $region32: #{tpu_custom_call.1} parent=27 // pred_fallthru
          _
        %s181 = sand.u32 %s66, 1
        %s182 = scalar_lea.sflag [#allocation6], %s181
        %s183 = sand.u32 %s66, 1
        %s184 = smul.addr %s183, 8
        %s185 = scalar_lea.vmem [#allocation5], %s184
        // Predicated region
        $region33: #{tpu_custom_call.1} parent=27 // pred_check
          %p186 = pneg %p79
        $region34: #{tpu_custom_call.1} parent=27 // pred_check_branch
          %188 = sbr.rel (%p186) target = $region36
        $region35: #{tpu_custom_call.1} parent=27 // pred_region
          %189 = dma.done %s182, 128
        $region36: #{tpu_custom_call.1} parent=27 // pred_fallthru
          _
        %s190 = sand.u32 %s34, 1
        %s191 = scalar_lea.sflag [#allocation3], %s190
        %s192 = sand.u32 %s34, 1
        %s193 = smul.addr %s192, 8
        %s194 = scalar_lea.vmem [#allocation2], %s193
        %p195 = pneg %p47
        %p196 = pneg %p44
        %s197 = sand.u32 %s66, 1
        %s198 = scalar_lea.sflag [#allocation6], %s197
        %s199 = sand.u32 %s66, 1
        %s200 = smul.addr %s199, 8
        %s201 = scalar_lea.vmem [#allocation5], %s200
        %p202 = pneg %p79
        %p203 = pneg %p76
        %p204 = pneg %p105
        %p205 = pneg %p102
        %s206 = sand.u32 %s92, 1
        %s207 = scalar_lea.sflag [#allocation4], %s206
        %s208 = sand.u32 %s92, 1
        %s209 = smul.addr %s208, 8
        %s210 = scalar_lea.vmem [#allocation7], %s209
        %p211 = scmp.lt.s32.totalorder %s22, 0
        %s212 = scalar_select %p211, %s22, 0
        %s213 = ssub.s32 %s22, 1
        %p214 = scmp.gt.s32.totalorder %s213, 0
        %s215 = scalar_select %p214, %s213, 0
        %p216 = scmp.lt.s32.totalorder %s22, 1
        // Predicated region
        $region37: #{tpu_custom_call.1} parent=27 // pred_check
          %p217 = pneg %p216
        $region38: #{tpu_custom_call.1} parent=27 // pred_check_branch
          %219 = sbr.rel (%p217) target = $region40
        $region39: #{tpu_custom_call.1} parent=27 // pred_region
          %v220 = vld [vmem:[%s176] sm:$0xff]
          %v221 = vmul.f32 %v220, %v220
          %vm222 = vcmask 261120
          %v223 = vsel %vm222, %v221, 0.0
          %224 = vadd.xlane.f32.xlu0 %v223
          %v225 = vpop.xlane.xlu0 %224
          %v226 = vmax.f32 %v225, 1e-24
          %v227 = vrsqrt.pop %v226
          %v228 = vmul.f32 %v220, %v227
          %v229 = vmul.f32 %v228, 3.1622777
          %230 = vst.msk [vmem:[%s210] sm:$0xff] %vm222, %v229
          %vm231 = vcmask 1047808
          %232 = vst.msk [vmem:[%s210] sm:$0xff] %vm231, 0.0
        $region40: #{tpu_custom_call.1} parent=27 // pred_fallthru
          _
        %p233 = scmp.ge.s32.totalorder %s22, 1
        // Predicated region
        $region41: #{tpu_custom_call.1} parent=27 // pred_check
          %p234 = pneg %p233
        $region42: #{tpu_custom_call.1} parent=27 // pred_check_branch
          %236 = sbr.rel (%p234) target = $region44
        $region43: #{tpu_custom_call.1} parent=27 // pred_region
          %v237 = vld [vmem:[%s185] sm:$0xff]
          %v238 = vmul.f32 %v237, %v237
          %vm239 = vcmask 261120
          %v240 = vsel %vm239, %v238, 0.0
          %241 = vadd.xlane.f32.xlu0 %v240
          %v242 = vpop.xlane.xlu0 %241
          %v243 = vmax.f32 %v242, 1e-24
          %v244 = vrsqrt.pop %v243
          %v245 = vmul.f32 %v237, %v244
          %v246 = vmul.f32 %v245, 3.1622777
          %247 = vst.msk [vmem:[%s210] sm:$0xff] %vm239, %v246
          %vm248 = vcmask 1047808
          %249 = vst.msk [vmem:[%s210] sm:$0xff] %vm248, 0.0
        $region44: #{tpu_custom_call.1} parent=27 // pred_fallthru
          _
        %s250 = sand.u32 %s92, 1
        %s251 = scalar_lea.sflag [#allocation4], %s250
        %s252 = sand.u32 %s92, 1
        %s253 = smul.addr %s252, 8
        %s254 = scalar_lea.vmem [#allocation7], %s253
        // Predicated region
        $region45: #{tpu_custom_call.1} parent=27 // pred_check
          %p255 = pneg %p102
        $region46: #{tpu_custom_call.1} parent=27 // pred_check_branch
          %257 = sbr.rel (%p255) target = $region48
        $region47: #{tpu_custom_call.1} parent=27 // pred_region
          %s259 = ssub.s32 128, 128
          %260 = vsyncadd %s251, %s259
          %s261 = smul.addr %s22, 128
          %s262 = scalar_lea.hbm %s2, %s261
          %s264 = sshll.u32 %s254, 4
          %s265 = int_to_ptr.vmem [resolvable:$true] %s264
          %267 = dma.vmem_to_hbm [thread:$0]  %s265, 128, %s262, %s251
        $region48: #{tpu_custom_call.1} parent=27 // pred_fallthru
          _
      $region28: #{tpu_custom_call.1} parent=5 // pred_fallthru
        _
      %p268 = scmp.le.s32.totalorder 2, %s17
      // Predicated region
      $region49: #{tpu_custom_call.1} parent=5 // pred_check
        %p269 = pneg %p268
      $region50: #{tpu_custom_call.1} parent=5 // pred_check_branch
        %271 = sbr.rel (%p269) target = $region52
      $region51: #{tpu_custom_call.1} parent=5 // pred_region
        %s272 = ssub.s32 %s17, 2
        // Predicated region
        $region53: #{tpu_custom_call.1} parent=51 // pred_check
          %p273 = pneg %p108
        $region54: #{tpu_custom_call.1} parent=51 // pred_check_branch
          %275 = sbr.rel (%p273) target = $region56
        $region55: #{tpu_custom_call.1} parent=51 // pred_region
          %s276 = sand.u32 %s93, 1
          %s277 = scalar_lea.sflag [#allocation4], %s276
          %s278 = sand.u32 %s93, 1
          %s279 = smul.addr %s278, 8
          %s280 = scalar_lea.vmem [#allocation7], %s279
          %281 = dma.done %s277, 128
        $region56: #{tpu_custom_call.1} parent=51 // pred_fallthru
          _
      $region52: #{tpu_custom_call.1} parent=5 // pred_fallthru
        _
    $region6: #{tpu_custom_call.1} parent=1 // loop_footer
      %s21 = sadd.s32 1, %s17
    $region7: #{tpu_custom_call.1} parent=1 // loop_footer_branch
      %16 = sbr.rel target = $region3
    $region8: #{tpu_custom_call.1} parent=1 // loop_exit
      _
    %282 = vsyncpa [#allocation3], 1
    %s283 = scalar_lea.sflag [#allocation3], 1
    %284 = vsyncpa %s283, 1
    %285 = vsyncpa [#allocation6], 1
    %s286 = scalar_lea.sflag [#allocation6], 1
    %287 = vsyncpa %s286, 1
    %288 = vsyncpa [#allocation4], 1
    %s289 = scalar_lea.sflag [#allocation4], 1
    %290 = vsyncpa %s289, 1

</llo_original>
